<compile_context>
chip_gen: v7x
topology: tpu7x:2x2x1
jax: 0.10.0
libtpu: 0.0.40
codegen_flags: <defaults>
</compile_context>

<pallas_src>
import jax
import jax.numpy as jnp
from jax.experimental import pallas as pl
from jax.experimental.pallas import tpu as pltpu


def ae_kernel(x_ref, w1_ref, b1_ref, w23_ref, b23_ref, w4_ref, b4_ref, o_ref):
    # bf16 operands on the MXU, f32 accumulation; f32 bias add / ReLU on the VPU.
    x = x_ref[...].astype(jnp.bfloat16)

    # encoder L1 + ReLU: (tile_m, in_f*P) @ (in_f*P, h1*P)
    h = jnp.dot(x, w1_ref[...], preferred_element_type=jnp.float32) + b1_ref[...]
    h = jnp.maximum(h, 0.0).astype(jnp.bfloat16)

    # folded [encoder L2 (no act) ; decoder L1] + ReLU: (tile_m, h1*P) @ (h1*P, h1*P)
    h = jnp.dot(h, w23_ref[...], preferred_element_type=jnp.float32) + b23_ref[...]
    h = jnp.maximum(h, 0.0).astype(jnp.bfloat16)

    # decoder L2 (no activation, last layer): (tile_m, h1*P) @ (h1*P, out_f*P)
    y = jnp.dot(h, w4_ref[...], preferred_element_type=jnp.float32) + b4_ref[...]
    o_ref[...] = y.astype(o_ref.dtype)


def _round_up(x, m):
    return ((x + m - 1) // m) * m


def _pick_pack_factor():
    """Lane-packing factor: 4 fills the 256-wide MXU on v6e/v7x; 2 exactly fills
    a 128-wide MXU tile on v5e and older without splitting pushes."""
    try:
        kind = jax.devices()[0].device_kind.lower()
    except Exception:
        return 2
    if "v6" in kind or "v7" in kind:
        return 4
    return 2


def _pick_grid(m, *, min_steps=8, max_tile=1024, single_step_max=512):
    """Returns (tile_m, steps, m_pad) for `m` packed rows.

    Small problems: one grid step (block == full array, avoids ~0.35us/step
    overhead).  Large problems: >= 8 (even) grid steps, tile_m a multiple of 8
    and capped at max_tile rows, so pipelining is effective and both v7x
    TensorCores get multiple steps along the 'parallel' axis."""
    if m <= single_step_max:
        return m, 1, m
    steps = max(min_steps, pl.cdiv(m, max_tile))
    if steps % 2:
        steps += 1                                  # even grid for v7x's 2 TCs
    tile_m = _round_up(pl.cdiv(m, steps), 8)
    return tile_m, steps, tile_m * steps


def linear_autoencoder(x, params, *, pack=None, out_dtype=None):
    """x: (B, in_features); params: list of 4 (W[in,out], b[1,out]) f32 tuples."""
    B, in_f = x.shape
    (w1, b1), (w2, b2), (w3, b3), (w4, b4) = params
    h1 = w1.shape[1]        # first hidden width (32)
    out_f = w4.shape[1]     # reconstruction width (== in_features)

    if out_dtype is None:
        out_dtype = x.dtype
    P = _pick_pack_factor() if pack is None else pack

    # Fold the two adjacent activation-free linears (encoder last, decoder first),
    # done once in f32 outside the grid.
    w23 = jnp.dot(w2, w3)                          # (h1, h1)
    b23 = jnp.dot(b2, w3) + b3                     # (1, h1)

    # Block-diagonal replicated weights (lane packing) + tiled biases.
    eye = jnp.eye(P, dtype=jnp.float32)
    w1p = jnp.kron(eye, w1).astype(jnp.bfloat16)   # (in_f*P, h1*P)
    w23p = jnp.kron(eye, w23).astype(jnp.bfloat16) # (h1*P,   h1*P)
    w4p = jnp.kron(eye, w4).astype(jnp.bfloat16)   # (h1*P,   out_f*P)
    b1p = jnp.tile(b1, (1, P))                     # (1, h1*P)    f32
    b23p = jnp.tile(b23, (1, P))                   # (1, h1*P)    f32
    b4p = jnp.tile(b4, (1, P))                     # (1, out_f*P) f32

    # Packed-row geometry; pad B so it divides P*tile_m, slice output at the end.
    M = pl.cdiv(B, P)
    tile_m, steps, m_pad = _pick_grid(M)
    b_pad = m_pad * P
    if b_pad != B:
        x = jnp.pad(x, ((0, b_pad - B), (0, 0)))
    xp = x.reshape(m_pad, in_f * P)                # free: row-major packing

    weight_bytes = 2 * (w1p.size + w23p.size + w4p.size) + 4 * (
        b1p.size + b23p.size + b4p.size)
    cost = pl.CostEstimate(
        flops=2 * b_pad * P * (in_f * h1 + h1 * h1 + h1 * out_f),
        transcendentals=0,
        bytes_accessed=b_pad * in_f * x.dtype.itemsize
        + b_pad * out_f * jnp.dtype(out_dtype).itemsize + weight_bytes,
    )

    def full_spec(a):
        shp = a.shape
        # Whole weight/bias resident in VMEM; constant index map => no re-DMA.
        return pl.BlockSpec(shp, lambda i: (0,) * len(shp))

    out_packed = pl.pallas_call(
        ae_kernel,
        out_shape=jax.ShapeDtypeStruct((m_pad, out_f * P), out_dtype),
        grid=(steps,),
        in_specs=[
            pl.BlockSpec((tile_m, in_f * P), lambda i: (i, 0)),
            full_spec(w1p), full_spec(b1p),
            full_spec(w23p), full_spec(b23p),
            full_spec(w4p), full_spec(b4p),
        ],
        out_specs=pl.BlockSpec((tile_m, out_f * P), lambda i: (i, 0)),
        compiler_params=pltpu.CompilerParams(
            dimension_semantics=("parallel",),
            vmem_limit_bytes=32 * 1024 * 1024,
        ),
        cost_estimate=cost,
    )(xp, w1p, b1p, w23p, b23p, w4p, b4p)

    y = out_packed.reshape(b_pad, out_f)
    return y[:B] if b_pad != B else y


def init_linear(key, fan_in, fan_out):
    """Mimics nn.Linear default init (uniform +-1/sqrt(fan_in)).
    Weight stored transposed as (in, out); bias as (1, out)."""
    kw, kb = jax.random.split(key)
    bound = 1.0 / jnp.sqrt(jnp.float32(fan_in))
    w = jax.random.uniform(kw, (fan_in, fan_out), jnp.float32, -bound, bound)
    b = jax.random.uniform(kb, (1, fan_out), jnp.float32, -bound, bound)
    return w, b


def reference_forward(x, params):
    """Pure-JAX f32 reference matching LinearAutoEncoder.forward exactly."""
    (w1, b1), (w2, b2), (w3, b3), (w4, b4) = params
    h = jnp.maximum(x @ w1 + b1, 0.0)
    z = h @ w2 + b2                       # encoder last layer: no activation
    h = jnp.maximum(z @ w3 + b3, 0.0)     # decoder first layer + ReLU
    return h @ w4 + b4                    # decoder last layer: no activation


if __name__ == "__main__":
    in_features = 64
    encoder_layers = [32, 16]    # encoder 64->32->16, decoder 16->32->64
    B = 16                       # small demo batch

    key = jax.random.PRNGKey(0)
    kx, k1, k2, k3, k4 = jax.random.split(key, 5)

    x = jax.random.normal(kx, (B, in_features), jnp.float32)

    dims = [in_features] + encoder_layers          # [64, 32, 16]
    dec_dims = dims[::-1]                          # [16, 32, 64]
    params = [
        init_linear(k1, dims[0], dims[1]),         # encoder L1: 64 -> 32
        init_linear(k2, dims[1], dims[2]),         # encoder L2: 32 -> 16
        init_linear(k3, dec_dims[0], dec_dims[1]), # decoder L1: 16 -> 32
        init_linear(k4, dec_dims[1], dec_dims[2]), # decoder L2: 32 -> 64
    ]

    out = jax.block_until_ready(linear_autoencoder(x, params))
    ref = reference_forward(x, params)
    assert out.shape == (B, in_features), out.shape
    # bf16 matmul operands + W2@W3 reassociation => loosened tolerance vs f32 ref.
    assert jnp.allclose(out, ref, atol=2e-2, rtol=2e-2), (
        float(jnp.max(jnp.abs(out - ref))))

    # Ragged batch (exercises the pad-to-tile-and-slice path).
    xr = x[:10]
    outr = jax.block_until_ready(linear_autoencoder(xr, params))
    refr = reference_forward(xr, params)
    assert outr.shape == (10, in_features), outr.shape
    assert jnp.allclose(outr, refr, atol=2e-2, rtol=2e-2), (
        float(jnp.max(jnp.abs(outr - refr))))

    print("KERNEL_OK")
</pallas_src>

<mosaic_0001>
module attributes {stable_mosaic.version = 11 : i64} {
  func.func @ae_kernel(%arg0: i32, %arg1: memref<8x128xf32, #tpu.memory_space<vmem>>, %arg2: memref<128x64xbf16, #tpu.memory_space<vmem>>, %arg3: memref<1x64xf32, #tpu.memory_space<vmem>>, %arg4: memref<64x64xbf16, #tpu.memory_space<vmem>>, %arg5: memref<1x64xf32, #tpu.memory_space<vmem>>, %arg6: memref<64x128xbf16, #tpu.memory_space<vmem>>, %arg7: memref<1x128xf32, #tpu.memory_space<vmem>>, %arg8: memref<8x128xf32, #tpu.memory_space<vmem>>) attributes {dimension_semantics = [#tpu.dimension_semantics<parallel>], iteration_bounds = array<i64: 1>, scalar_prefetch = 0 : i64, scratch_operands = 0 : i64, tpu.core_type = #tpu.core_type<tc>, window_params = [{transform_indices = @transform_0, window_bounds = array<i64: 8, 128>}, {pipeline_mode = #tpu.pipeline_mode<synchronous>, transform_indices = @transform_1, window_bounds = array<i64: 128, 64>}, {pipeline_mode = #tpu.pipeline_mode<synchronous>, transform_indices = @transform_2, window_bounds = array<i64: 1, 64>}, {pipeline_mode = #tpu.pipeline_mode<synchronous>, transform_indices = @transform_3, window_bounds = array<i64: 64, 64>}, {pipeline_mode = #tpu.pipeline_mode<synchronous>, transform_indices = @transform_4, window_bounds = array<i64: 1, 64>}, {pipeline_mode = #tpu.pipeline_mode<synchronous>, transform_indices = @transform_5, window_bounds = array<i64: 64, 128>}, {pipeline_mode = #tpu.pipeline_mode<synchronous>, transform_indices = @transform_6, window_bounds = array<i64: 1, 128>}, {transform_indices = @transform_7, window_bounds = array<i64: 8, 128>}]} {
    %c0 = arith.constant 0 : index
    %c0_0 = arith.constant 0 : index
    %0 = vector.load %arg1[%c0, %c0_0] : memref<8x128xf32, #tpu.memory_space<vmem>>, vector<8x128xf32>
    %1 = arith.truncf %0 : vector<8x128xf32> to vector<8x128xbf16>
    %c0_1 = arith.constant 0 : index
    %c0_2 = arith.constant 0 : index
    %2 = vector.load %arg2[%c0_1, %c0_2] : memref<128x64xbf16, #tpu.memory_space<vmem>>, vector<128x64xbf16>
    %cst = arith.constant dense<0.000000e+00> : vector<8x64xf32>
    %3 = tpu.matmul %1, %2, %cst {dimension_numbers = #tpu.dot_dimension_numbers<[1], [0], [0], [1], [0, 0, 1, 1], [], []>} : vector<8x128xbf16>, vector<128x64xbf16>, vector<8x64xf32> -> vector<8x64xf32>
    %c0_3 = arith.constant 0 : index
    %c0_4 = arith.constant 0 : index
    %4 = vector.load %arg3[%c0_3, %c0_4] : memref<1x64xf32, #tpu.memory_space<vmem>>, vector<1x64xf32>
    %5 = vector.broadcast %4 : vector<1x64xf32> to vector<8x64xf32>
    %6 = arith.addf %3, %5 : vector<8x64xf32>
    %cst_5 = arith.constant 0.000000e+00 : f32
    %7 = vector.broadcast %cst_5 : f32 to vector<8x64xf32>
    %8 = arith.maximumf %6, %7 : vector<8x64xf32>
    %9 = arith.truncf %8 : vector<8x64xf32> to vector<8x64xbf16>
    %c0_6 = arith.constant 0 : index
    %c0_7 = arith.constant 0 : index
    %10 = vector.load %arg4[%c0_6, %c0_7] : memref<64x64xbf16, #tpu.memory_space<vmem>>, vector<64x64xbf16>
    %cst_8 = arith.constant dense<0.000000e+00> : vector<8x64xf32>
    %11 = tpu.matmul %9, %10, %cst_8 {dimension_numbers = #tpu.dot_dimension_numbers<[1], [0], [0], [1], [0, 0, 1, 1], [], []>} : vector<8x64xbf16>, vector<64x64xbf16>, vector<8x64xf32> -> vector<8x64xf32>
    %c0_9 = arith.constant 0 : index
    %c0_10 = arith.constant 0 : index
    %12 = vector.load %arg5[%c0_9, %c0_10] : memref<1x64xf32, #tpu.memory_space<vmem>>, vector<1x64xf32>
    %13 = vector.broadcast %12 : vector<1x64xf32> to vector<8x64xf32>
    %14 = arith.addf %11, %13 : vector<8x64xf32>
    %cst_11 = arith.constant 0.000000e+00 : f32
    %15 = vector.broadcast %cst_11 : f32 to vector<8x64xf32>
    %16 = arith.maximumf %14, %15 : vector<8x64xf32>
    %17 = arith.truncf %16 : vector<8x64xf32> to vector<8x64xbf16>
    %c0_12 = arith.constant 0 : index
    %c0_13 = arith.constant 0 : index
    %18 = vector.load %arg6[%c0_12, %c0_13] : memref<64x128xbf16, #tpu.memory_space<vmem>>, vector<64x128xbf16>
    %cst_14 = arith.constant dense<0.000000e+00> : vector<8x128xf32>
    %19 = tpu.matmul %17, %18, %cst_14 {dimension_numbers = #tpu.dot_dimension_numbers<[1], [0], [0], [1], [0, 0, 1, 1], [], []>} : vector<8x64xbf16>, vector<64x128xbf16>, vector<8x128xf32> -> vector<8x128xf32>
    %c0_15 = arith.constant 0 : index
    %c0_16 = arith.constant 0 : index
    %20 = vector.load %arg7[%c0_15, %c0_16] : memref<1x128xf32, #tpu.memory_space<vmem>>, vector<1x128xf32>
    %21 = vector.broadcast %20 : vector<1x128xf32> to vector<8x128xf32>
    %22 = arith.addf %19, %21 : vector<8x128xf32>
    %c0_17 = arith.constant 0 : index
    %c0_18 = arith.constant 0 : index
    %23 = vector.load %arg8[%c0_17, %c0_18] : memref<8x128xf32, #tpu.memory_space<vmem>>, vector<8x128xf32>
    tpu.vector_store %arg8[%c0_17, %c0_18], %22 {strides = array<i32>} : memref<8x128xf32, #tpu.memory_space<vmem>>, vector<8x128xf32>,
    return
  }
  func.func @transform_0(%arg0: i32) -> (i32, i32) {
    %c0_i32 = arith.constant 0 : i32
    %c0_i32_0 = arith.constant 0 : i32
    return %arg0, %c0_i32 : i32, i32
  }
  func.func @transform_1(%arg0: i32) -> (i32, i32) {
    %c0_i32 = arith.constant 0 : i32
    %c0_i32_0 = arith.constant 0 : i32
    %c0_i32_1 = arith.constant 0 : i32
    return %c0_i32, %c0_i32_0 : i32, i32
  }
  func.func @transform_2(%arg0: i32) -> (i32, i32) {
    %c0_i32 = arith.constant 0 : i32
    %c0_i32_0 = arith.constant 0 : i32
    %c0_i32_1 = arith.constant 0 : i32
    return %c0_i32, %c0_i32_0 : i32, i32
  }
  func.func @transform_3(%arg0: i32) -> (i32, i32) {
    %c0_i32 = arith.constant 0 : i32
    %c0_i32_0 = arith.constant 0 : i32
    %c0_i32_1 = arith.constant 0 : i32
    return %c0_i32, %c0_i32_0 : i32, i32
  }
  func.func @transform_4(%arg0: i32) -> (i32, i32) {
    %c0_i32 = arith.constant 0 : i32
    %c0_i32_0 = arith.constant 0 : i32
    %c0_i32_1 = arith.constant 0 : i32
    return %c0_i32, %c0_i32_0 : i32, i32
  }
  func.func @transform_5(%arg0: i32) -> (i32, i32) {
    %c0_i32 = arith.constant 0 : i32
    %c0_i32_0 = arith.constant 0 : i32
    %c0_i32_1 = arith.constant 0 : i32
    return %c0_i32, %c0_i32_0 : i32, i32
  }
  func.func @transform_6(%arg0: i32) -> (i32, i32) {
    %c0_i32 = arith.constant 0 : i32
    %c0_i32_0 = arith.constant 0 : i32
    %c0_i32_1 = arith.constant 0 : i32
    return %c0_i32, %c0_i32_0 : i32, i32
  }
  func.func @transform_7(%arg0: i32) -> (i32, i32) {
    %c0_i32 = arith.constant 0 : i32
    %c0_i32_0 = arith.constant 0 : i32
    return %arg0, %c0_i32 : i32, i32
  }
}

</mosaic_0001>

<llo_original>
// kernel: tpu_custom_call.1
$region0: #{tpu_custom_call.1}
  #allocation0 [shape = 'u32[]', space=smem, size = 0x4, offset = 0x4, fixed_abs, tag = 'smem constant byte address 0x4 - core index']
  #allocation1 [shape = 'u32[144,128]{1,0:T(1,128)}', space=vmem, size = 0x12000, scoped, tag = 'internal scratch']
  %s0 = inlined_call_operand.vmem [shape: f32[8,128], index: 0, kind: input, shape index: {}]
  %s1 = inlined_call_operand.vmem [shape: bf16[128,64], index: 1, kind: input, shape index: {}]
  %s2 = inlined_call_operand.vmem [shape: f32[1,64], index: 2, kind: input, shape index: {}]
  %s3 = inlined_call_operand.vmem [shape: bf16[64,64], index: 3, kind: input, shape index: {}]
  %s4 = inlined_call_operand.vmem [shape: f32[1,64], index: 4, kind: input, shape index: {}]
  %s5 = inlined_call_operand.vmem [shape: bf16[64,128], index: 5, kind: input, shape index: {}]
  %s6 = inlined_call_operand.vmem [shape: f32[1,128], index: 6, kind: input, shape index: {}]
  %s7 = inlined_call_operand.hbm [shape: f32[8,128], index: 7, kind: output, shape index: {}]
  %s8 = sld [smem:[#allocation0]]
  $region38: #{tpu_custom_call.1} parent=0
    _
  %s10 = ssub.s32 1, %s8
  %s11 = scalar_select 0, %s10, %s8
  $region1: #{tpu_custom_call.1} parent=0
    #allocation2 [shape = 'u8[4096]{0}', space=vmem, size = 0x1000, scoped, tag = 'output window, operand 0, single buffered']
    #allocation3 [shape = 's32[1]{0}', space=sflag, size = 0x4, scoped, tag = 'scoped memory for tpu_custom_call.1']
    %12 = vsyncpa [#allocation3], 0
    // Predicated region
    $region2: #{tpu_custom_call.1} parent=1 // pred_check
      _
    $region3: #{tpu_custom_call.1} parent=1 // pred_check_branch
      %14 = sbr.rel (0) target = $region5
    $region4: #{tpu_custom_call.1} parent=1 // pred_region
      _
    $region5: #{tpu_custom_call.1} parent=1 // pred_fallthru
      _
    // Predicated region
    $region6: #{tpu_custom_call.1} parent=1 // pred_check
      _
    $region7: #{tpu_custom_call.1} parent=1 // pred_check_branch
      %16 = sbr.rel (0) target = $region9
    $region8: #{tpu_custom_call.1} parent=1 // pred_region
      _
    $region9: #{tpu_custom_call.1} parent=1 // pred_fallthru
      _
    // Predicated region
    $region10: #{tpu_custom_call.1} parent=1 // pred_check
      _
    $region11: #{tpu_custom_call.1} parent=1 // pred_check_branch
      %18 = sbr.rel (0) target = $region13
    $region12: #{tpu_custom_call.1} parent=1 // pred_region
      _
    $region13: #{tpu_custom_call.1} parent=1 // pred_fallthru
      _
    // Predicated region
    $region14: #{tpu_custom_call.1} parent=1 // pred_check
      _
    $region15: #{tpu_custom_call.1} parent=1 // pred_check_branch
      %20 = sbr.rel (0) target = $region17
    $region16: #{tpu_custom_call.1} parent=1 // pred_region
      _
    $region17: #{tpu_custom_call.1} parent=1 // pred_fallthru
      _
    // Predicated region
    $region18: #{tpu_custom_call.1} parent=1 // pred_check
      _
    $region19: #{tpu_custom_call.1} parent=1 // pred_check_branch
      %22 = sbr.rel (0) target = $region21
    $region20: #{tpu_custom_call.1} parent=1 // pred_region
      _
    $region21: #{tpu_custom_call.1} parent=1 // pred_fallthru
      _
    // Predicated region
    $region22: #{tpu_custom_call.1} parent=1 // pred_check
      _
    $region23: #{tpu_custom_call.1} parent=1 // pred_check_branch
      %24 = sbr.rel (0) target = $region25
    $region24: #{tpu_custom_call.1} parent=1 // pred_region
      _
    $region25: #{tpu_custom_call.1} parent=1 // pred_fallthru
      _
    // Predicated region
    $region26: #{tpu_custom_call.1} parent=1 // pred_check
      _
    $region27: #{tpu_custom_call.1} parent=1 // pred_check_branch
      %26 = sbr.rel (0) target = $region29
    $region28: #{tpu_custom_call.1} parent=1 // pred_region
      _
    $region29: #{tpu_custom_call.1} parent=1 // pred_fallthru
      _
    %v28 = vld [vmem:[%s0] sm:$0xff]
    %v29 = vpack.c.bf16 %v28, %v28
    %v30 = vld [vmem:[%s1] sm:$0xf]
    %v31 = vld [vmem:[%s1 + $0x4] sm:$0xf]
    %v32 = vld [vmem:[%s1 + $0x8] sm:$0xf]
    %v33 = vld [vmem:[%s1 + $0xc] sm:$0xf]
    %v34 = vld [vmem:[%s1 + $0x10] sm:$0xf]
    %v35 = vld [vmem:[%s1 + $0x14] sm:$0xf]
    %v36 = vld [vmem:[%s1 + $0x18] sm:$0xf]
    %v37 = vld [vmem:[%s1 + $0x1c] sm:$0xf]
    %v38 = vld [vmem:[%s1 + $0x20] sm:$0xf]
    %v39 = vld [vmem:[%s1 + $0x24] sm:$0xf]
    %v40 = vld [vmem:[%s1 + $0x28] sm:$0xf]
    %v41 = vld [vmem:[%s1 + $0x2c] sm:$0xf]
    %v42 = vld [vmem:[%s1 + $0x30] sm:$0xf]
    %v43 = vld [vmem:[%s1 + $0x34] sm:$0xf]
    %v44 = vld [vmem:[%s1 + $0x38] sm:$0xf]
    %v45 = vld [vmem:[%s1 + $0x3c] sm:$0xf]
    %v46 = vld [vmem:[%s2] sm:$0x1]
    %v48 = vlaneseq
    %v49 = vshrl.u32 %v48, 7
    %v50 = vsub.s32 0, %v49
    %v51 = vrot.slane %v46, %v50
    %v69 = vunpack.c.l.b16 %v30
    %v70 = vunpack.c.l.b16 %v31
    %v71 = vunpack.c.l.b16 %v32
    %v72 = vunpack.c.l.b16 %v33
    %v73 = vunpack.c.l.b16 %v34
    %v74 = vunpack.c.l.b16 %v35
    %v75 = vunpack.c.l.b16 %v36
    %v76 = vunpack.c.l.b16 %v37
    %v77 = vunpack.c.l.b16 %v38
    %v78 = vunpack.c.l.b16 %v39
    %v79 = vunpack.c.l.b16 %v40
    %v80 = vunpack.c.l.b16 %v41
    %v81 = vunpack.c.l.b16 %v42
    %v82 = vunpack.c.l.b16 %v43
    %v83 = vunpack.c.l.b16 %v44
    %v84 = vunpack.c.l.b16 %v45
    %v85 = vpack.c.b16 %v70, %v69
    %v86 = vpack.c.b16 %v72, %v71
    %v87 = vpack.c.b16 %v74, %v73
    %v88 = vpack.c.b16 %v76, %v75
    %v89 = vpack.c.b16 %v78, %v77
    %v90 = vpack.c.b16 %v80, %v79
    %v91 = vpack.c.b16 %v82, %v81
    %v92 = vpack.c.b16 %v84, %v83
    %101 = vmatprep.subr.bf16.mxu0 0
    %102 = vmatpush1.bf16.msra.mxu0 %v85
    %103 = vmatprep.subr.bf16.mxu0 0
    %104 = vmatpush1.bf16.msra.mxu0 %v86
    %105 = vmatprep.subr.bf16.mxu0 0
    %106 = vmatpush1.bf16.msra.mxu0 %v87
    %107 = vmatprep.subr.bf16.mxu0 0
    %108 = vmatpush1.bf16.msra.mxu0 %v88
    %109 = vmatprep.subr.bf16.mxu0 0
    %110 = vmatpush1.bf16.msra.mxu0 %v89
    %111 = vmatprep.subr.bf16.mxu0 0
    %112 = vmatpush1.bf16.msra.mxu0 %v90
    %113 = vmatprep.subr.bf16.mxu0 0
    %114 = vmatpush1.bf16.msra.mxu0 %v91
    %115 = vmatprep.subr.bf16.mxu0 0
    %116 = vmatpush1.bf16.msra.mxu0 %v92
    %117 = vmatprep.subr.bf16.mxu0 0
    %118 = vmatpush1.bf16.msra.mxu0 0
    %119 = vmatprep.subr.bf16.mxu0 0
    %120 = vmatpush1.bf16.msra.mxu0 0
    %121 = vmatprep.subr.bf16.mxu0 0
    %122 = vmatpush1.bf16.msra.mxu0 0
    %123 = vmatprep.subr.bf16.mxu0 0
    %124 = vmatpush1.bf16.msra.mxu0 0
    %125 = vmatprep.subr.bf16.mxu0 0
    %126 = vmatpush1.bf16.msra.mxu0 0
    %127 = vmatprep.subr.bf16.mxu0 0
    %128 = vmatpush1.bf16.msra.mxu0 0
    %129 = vmatprep.subr.bf16.mxu0 0
    %130 = vmatpush1.bf16.msra.mxu0 0
    %131 = vmatprep.subr.bf16.mxu0 0
    %132 = vmatpush1.bf16.msra.mxu0 0
    %133 = vmatprep.mubr.bf16.mxu0 0
    %134 = vmatmul.mubr.bf16.gmra.mrb[0].mxu0 %v29
    %v135 = vpop.f32.mrb[0].mxu0
    %v136 = vadd.f32 %v51, %v135
    %v137 = vpop.f32.mrb[0].mxu0
    %v138 = vpop.f32.mrb[0].mxu0
    %v139 = vpop.f32.mrb[0].mxu0
    %140 = vdwg.mxu0
    %v141 = vmax.f32 %v136, 0.0
    %v142 = vpack.c.bf16 %v141, %v141
    %v143 = vld [vmem:[%s3] sm:$0xf]
    %v144 = vld [vmem:[%s3 + $0x4] sm:$0xf]
    %v145 = vld [vmem:[%s3 + $0x8] sm:$0xf]
    %v146 = vld [vmem:[%s3 + $0xc] sm:$0xf]
    %v147 = vld [vmem:[%s3 + $0x10] sm:$0xf]
    %v148 = vld [vmem:[%s3 + $0x14] sm:$0xf]
    %v149 = vld [vmem:[%s3 + $0x18] sm:$0xf]
    %v150 = vld [vmem:[%s3 + $0x1c] sm:$0xf]
    %v151 = vld [vmem:[%s4] sm:$0x1]
    %v153 = vlaneseq
    %v154 = vshrl.u32 %v153, 7
    %v155 = vsub.s32 0, %v154
    %v156 = vrot.slane %v151, %v155
    %v166 = vunpack.c.l.b16 %v143
    %v167 = vunpack.c.l.b16 %v144
    %v168 = vunpack.c.l.b16 %v145
    %v169 = vunpack.c.l.b16 %v146
    %v170 = vunpack.c.l.b16 %v147
    %v171 = vunpack.c.l.b16 %v148
    %v172 = vunpack.c.l.b16 %v149
    %v173 = vunpack.c.l.b16 %v150
    %v174 = vpack.c.b16 %v167, %v166
    %v175 = vpack.c.b16 %v169, %v168
    %v176 = vpack.c.b16 %v171, %v170
    %v177 = vpack.c.b16 %v173, %v172
    %vm182 = vcmask 523264
    %v184 = vsel %vm182, %v142, 0
    %186 = vmatprep.subr.bf16.mxu0 0
    %187 = vmatpush1.bf16.msra.mxu0 %v174
    %188 = vmatprep.subr.bf16.mxu0 0
    %189 = vmatpush1.bf16.msra.mxu0 %v175
    %190 = vmatprep.subr.bf16.mxu0 0
    %191 = vmatpush1.bf16.msra.mxu0 %v176
    %192 = vmatprep.subr.bf16.mxu0 0
    %193 = vmatpush1.bf16.msra.mxu0 %v177
    %194 = vmatprep.subr.bf16.mxu0 0
    %195 = vmatpush1.bf16.msra.mxu0 0
    %196 = vmatprep.subr.bf16.mxu0 0
    %197 = vmatpush1.bf16.msra.mxu0 0
    %198 = vmatprep.subr.bf16.mxu0 0
    %199 = vmatpush1.bf16.msra.mxu0 0
    %200 = vmatprep.subr.bf16.mxu0 0
    %201 = vmatpush1.bf16.msra.mxu0 0
    %202 = vmatprep.subr.bf16.mxu0 0
    %203 = vmatpush1.bf16.msra.mxu0 0
    %204 = vmatprep.subr.bf16.mxu0 0
    %205 = vmatpush1.bf16.msra.mxu0 0
    %206 = vmatprep.subr.bf16.mxu0 0
    %207 = vmatpush1.bf16.msra.mxu0 0
    %208 = vmatprep.subr.bf16.mxu0 0
    %209 = vmatpush1.bf16.msra.mxu0 0
    %210 = vmatprep.subr.bf16.mxu0 0
    %211 = vmatpush1.bf16.msra.mxu0 0
    %212 = vmatprep.subr.bf16.mxu0 0
    %213 = vmatpush1.bf16.msra.mxu0 0
    %214 = vmatprep.subr.bf16.mxu0 0
    %215 = vmatpush1.bf16.msra.mxu0 0
    %216 = vmatprep.subr.bf16.mxu0 0
    %217 = vmatpush1.bf16.msra.mxu0 0
    %218 = vmatprep.mubr.bf16.mxu0 0
    %219 = vmatmul.mubr.bf16.gmra.mrb[0].mxu0 %v184
    %v220 = vpop.f32.mrb[0].mxu0
    %v221 = vadd.f32 %v156, %v220
    %v222 = vpop.f32.mrb[0].mxu0
    %v223 = vpop.f32.mrb[0].mxu0
    %v224 = vpop.f32.mrb[0].mxu0
    %225 = vdwg.mxu0
    %v226 = vmax.f32 %v221, 0.0
    %v227 = vpack.c.bf16 %v226, %v226
    %v228 = vld [vmem:[%s5] sm:$0xf]
    %v229 = vld [vmem:[%s5 + $0x4] sm:$0xf]
    %v230 = vld [vmem:[%s5 + $0x8] sm:$0xf]
    %v231 = vld [vmem:[%s5 + $0xc] sm:$0xf]
    %v232 = vld [vmem:[%s5 + $0x10] sm:$0xf]
    %v233 = vld [vmem:[%s5 + $0x14] sm:$0xf]
    %v234 = vld [vmem:[%s5 + $0x18] sm:$0xf]
    %v235 = vld [vmem:[%s5 + $0x1c] sm:$0xf]
    %v236 = vld [vmem:[%s6] sm:$0x1]
    %v238 = vlaneseq
    %v239 = vshrl.u32 %v238, 7
    %v240 = vsub.s32 0, %v239
    %v241 = vrot.slane %v236, %v240
    %v251 = vunpack.c.l.b16 %v228
    %v252 = vunpack.c.l.b16 %v229
    %v253 = vunpack.c.l.b16 %v230
    %v254 = vunpack.c.l.b16 %v231
    %v255 = vunpack.c.l.b16 %v232
    %v256 = vunpack.c.l.b16 %v233
    %v257 = vunpack.c.l.b16 %v234
    %v258 = vunpack.c.l.b16 %v235
    %v259 = vpack.c.b16 %v252, %v251
    %v260 = vpack.c.b16 %v254, %v253
    %v261 = vpack.c.b16 %v256, %v255
    %v262 = vpack.c.b16 %v258, %v257
    %v268 = vsel %vm182, %v227, 0
    %270 = vmatprep.subr.bf16.mxu0 0
    %271 = vmatpush1.bf16.msra.mxu0 %v259
    %272 = vmatprep.subr.bf16.mxu0 0
    %273 = vmatpush1.bf16.msra.mxu0 %v260
    %274 = vmatprep.subr.bf16.mxu0 0
    %275 = vmatpush1.bf16.msra.mxu0 %v261
    %276 = vmatprep.subr.bf16.mxu0 0
    %277 = vmatpush1.bf16.msra.mxu0 %v262
    %278 = vmatprep.subr.bf16.mxu0 0
    %279 = vmatpush1.bf16.msra.mxu0 0
    %280 = vmatprep.subr.bf16.mxu0 0
    %281 = vmatpush1.bf16.msra.mxu0 0
    %282 = vmatprep.subr.bf16.mxu0 0
    %283 = vmatpush1.bf16.msra.mxu0 0
    %284 = vmatprep.subr.bf16.mxu0 0
    %285 = vmatpush1.bf16.msra.mxu0 0
    %286 = vmatprep.subr.bf16.mxu0 0
    %287 = vmatpush1.bf16.msra.mxu0 0
    %288 = vmatprep.subr.bf16.mxu0 0
    %289 = vmatpush1.bf16.msra.mxu0 0
    %290 = vmatprep.subr.bf16.mxu0 0
    %291 = vmatpush1.bf16.msra.mxu0 0
    %292 = vmatprep.subr.bf16.mxu0 0
    %293 = vmatpush1.bf16.msra.mxu0 0
    %294 = vmatprep.subr.bf16.mxu0 0
    %295 = vmatpush1.bf16.msra.mxu0 0
    %296 = vmatprep.subr.bf16.mxu0 0
    %297 = vmatpush1.bf16.msra.mxu0 0
    %298 = vmatprep.subr.bf16.mxu0 0
    %299 = vmatpush1.bf16.msra.mxu0 0
    %300 = vmatprep.subr.bf16.mxu0 0
    %301 = vmatpush1.bf16.msra.mxu0 0
    %302 = vmatprep.mubr.bf16.mxu0 0
    %303 = vmatmul.mubr.bf16.gmra.mrb[0].mxu0 %v268
    %v304 = vpop.f32.mrb[0].mxu0
    %v305 = vadd.f32 %v241, %v304
    %v306 = vpop.f32.mrb[0].mxu0
    %v307 = vpop.f32.mrb[0].mxu0
    %v308 = vpop.f32.mrb[0].mxu0
    %309 = vdwg.mxu0
    %310 = vst [vmem:[#allocation2] sm:$0xff] %v305
    // Predicated region
    $region30: #{tpu_custom_call.1} parent=1 // pred_check
      _
    $region31: #{tpu_custom_call.1} parent=1 // pred_check_branch
      %312 = sbr.rel (0) target = $region33
    $region32: #{tpu_custom_call.1} parent=1 // pred_region
      %s314 = ssub.s32 128, 128
      %315 = vsyncadd [#allocation3], %s314
      %s317 = sshll.u32 [#allocation2], 4
      %s318 = int_to_ptr.vmem [resolvable:$true] %s317
      %320 = dma.vmem_to_hbm [thread:$0]  %s318, 128, %s7, [#allocation3]
    $region33: #{tpu_custom_call.1} parent=1 // pred_fallthru
      _
    // Predicated region
    $region34: #{tpu_custom_call.1} parent=1 // pred_check
      _
    $region35: #{tpu_custom_call.1} parent=1 // pred_check_branch
      %322 = sbr.rel (0) target = $region37
    $region36: #{tpu_custom_call.1} parent=1 // pred_region
      %323 = dma.done [#allocation3], 128
    $region37: #{tpu_custom_call.1} parent=1 // pred_fallthru
      _
    %324 = vsyncpa [#allocation3], 1

</llo_original>
